<compile_context>
chip_gen: v7x
topology: tpu7x:2x2x1
jax: 0.10.0
libtpu: 0.0.40
codegen_flags: <defaults>
</compile_context>

<pallas_src>
import functools

import jax
import jax.numpy as jnp
from jax.experimental import pallas as pl
from jax.experimental.pallas import tpu as pltpu


def _rank_hinge_kernel(y_ref, out_ref, *, C, num_neg, margin, reduction):
    # y_ref: (K*C, G) lane-dense view.
    #   rows [0, C)      : the C score columns of the positive item
    #   rows [C, K*C)    : the num_neg*C score columns of the negatives
    # All math in f32 (no MXU work here; v5e's VPU has no bf16 path).
    y = y_ref[...].astype(jnp.float32)

    y_pos = y[:C, :]                                      # (C, G)

    # Mean over ALL negative scores of the group.  num_neg*C is a tiny static
    # constant -> unroll as elementwise VPU adds (no XLU reduce needed).
    neg_rows = num_neg * C
    neg_sum = y[C:C + 1, :]                               # (1, G)
    for j in range(1, neg_rows):
        neg_sum = neg_sum + y[C + j:C + j + 1, :]
    y_neg_mean = neg_sum * jnp.float32(1.0 / neg_rows)    # (1, G)

    # Margin ranking loss with y_true == +1:  max(0, margin - (pos - neg)).
    loss = jnp.maximum(jnp.float32(margin) - (y_pos - y_neg_mean),
                       jnp.float32(0.0))                  # (C, G)

    if reduction == "none":
        out_ref[...] = loss.astype(out_ref.dtype)         # lane-dense store
    else:
        # Reduce lanes first, then sublanes -> (1, 1).
        total = jnp.sum(jnp.sum(loss, axis=1, keepdims=True), axis=0,
                        keepdims=True)
        if reduction == "mean":
            total = total * jnp.float32(1.0 / loss.size)  # divide by G*C
        out_ref[...] = total.astype(out_ref.dtype)


def rank_hinge_loss(y_pred, y_true=None, *, num_neg: int = 1,
                    margin: float = 1.0, reduction: str = "mean"):
    """Pallas equivalent of RankHingeLoss(num_neg, margin, reduction).

    `y_true` is accepted for signature parity but ignored (the PyTorch module
    replaces it with ones).
    """
    del y_true
    assert reduction in ("mean", "sum", "none")
    N, C = y_pred.shape
    K = num_neg + 1
    # NOTE: stricter than torch's silent strided slicing (which would anyway
    # fail downstream unless the pos/neg slice lengths agree).
    assert N % K == 0, "batch must be a multiple of (num_neg + 1)"
    G = N // K

    # Lane-dense relayout (pure wrapper-side layout plumbing on tiny data):
    #   (G*K, C) -> (G, K, C) -> (K, C, G) -> (K*C, G)
    # Row i*C + c holds score column c of item i (i==0 is the positive) for
    # every group; groups live on the lane axis.
    y2 = jnp.transpose(y_pred.reshape(G, K, C), (1, 2, 0)).reshape(K * C, G)

    if reduction == "none":
        out_shape = jax.ShapeDtypeStruct((C, G), y_pred.dtype)
        out_spec = pl.BlockSpec((C, G), lambda i: (0, 0))
        out_bytes = C * G * y_pred.dtype.itemsize
    else:
        # A single (1,1) f32 VMEM block: one tiny writeback, kept in VMEM for
        # lowering robustness (SMEM scalar output would save <1us).
        out_shape = jax.ShapeDtypeStruct((1, 1), jnp.float32)
        out_spec = pl.BlockSpec((1, 1), lambda i: (0, 0))
        out_bytes = 4

    kernel = functools.partial(
        _rank_hinge_kernel, C=C, num_neg=num_neg,
        margin=float(margin), reduction=reduction)

    # Tiny, latency-bound kernel: accurate (small) cost estimate so XLA does
    # not over-schedule around the custom call.
    cost = pl.CostEstimate(
        flops=int(G * (num_neg * C + 3 * C + 2)),
        transcendentals=0,
        bytes_accessed=int(y2.size * y2.dtype.itemsize + out_bytes))

    out = pl.pallas_call(
        kernel,
        out_shape=out_shape,
        grid_spec=pltpu.PrefetchScalarGridSpec(
            num_scalar_prefetch=0,
            grid=(1,),
            in_specs=[pl.BlockSpec((K * C, G), lambda i: (0, 0))],
            out_specs=out_spec,
        ),
        compiler_params=pltpu.CompilerParams(
            dimension_semantics=("arbitrary",),
        ),
        cost_estimate=cost,
    )(y2)

    if reduction == "none":
        return jnp.transpose(out)                 # back to torch's (G, C)
    return out[0, 0].astype(y_pred.dtype)


def _ref_rank_hinge_loss(y_pred, num_neg, margin, reduction):
    """Pure-JAX reference replicating the PyTorch forward verbatim."""
    K = num_neg + 1
    y_pos = y_pred[::K, :]
    negs = [y_pred[i + 1::K, :] for i in range(num_neg)]
    y_neg = jnp.concatenate(negs, axis=-1)
    y_neg = jnp.mean(y_neg, axis=-1, keepdims=True)
    loss = jnp.maximum(margin - (y_pos - y_neg), 0.0)
    if reduction == "mean":
        return jnp.mean(loss)
    if reduction == "sum":
        return jnp.sum(loss)
    return loss


if __name__ == "__main__":
    key = jax.random.PRNGKey(0)
    k1, k2 = jax.random.split(key)

    # Case 1: default config (num_neg=1, margin=1.0, reduction='mean'),
    # y_pred shaped like the upstream test: (4, 4).
    y_pred1 = jax.random.normal(k1, (4, 4), dtype=jnp.float32)
    out1 = jax.block_until_ready(rank_hinge_loss(y_pred1))
    ref1 = _ref_rank_hinge_loss(y_pred1, num_neg=1, margin=1.0,
                                reduction="mean")
    assert out1.shape == ()
    assert jnp.allclose(out1, ref1, atol=1e-5, rtol=1e-5)

    # Case 2: num_neg=2, MatchZoo-style scores of shape (batch*(num_neg+1), 1).
    y_pred2 = jax.random.normal(k2, (24, 1), dtype=jnp.float32)
    out2 = jax.block_until_ready(
        rank_hinge_loss(y_pred2, num_neg=2, margin=0.5, reduction="mean"))
    ref2 = _ref_rank_hinge_loss(y_pred2, num_neg=2, margin=0.5,
                                reduction="mean")
    assert jnp.allclose(out2, ref2, atol=1e-5, rtol=1e-5)

    # Case 3: reduction='none' path (per-group, per-column losses).
    out3 = jax.block_until_ready(
        rank_hinge_loss(y_pred1, num_neg=1, margin=1.0, reduction="none"))
    ref3 = _ref_rank_hinge_loss(y_pred1, num_neg=1, margin=1.0,
                                reduction="none")
    assert out3.shape == ref3.shape == (2, 4)
    assert jnp.allclose(out3, ref3, atol=1e-5, rtol=1e-5)

    # Case 4: reduction='sum'.
    out4 = jax.block_until_ready(
        rank_hinge_loss(y_pred2, num_neg=2, margin=1.0, reduction="sum"))
    ref4 = _ref_rank_hinge_loss(y_pred2, num_neg=2, margin=1.0,
                                reduction="sum")
    assert jnp.allclose(out4, ref4, atol=1e-5, rtol=1e-5)

    print("KERNEL_OK")
</pallas_src>

<mosaic_0001>
module attributes {stable_mosaic.version = 11 : i64} {
  func.func @_rank_hinge_kernel(%arg0: i32, %arg1: memref<8x2xf32, #tpu.memory_space<vmem>>, %arg2: memref<1x1xf32, #tpu.memory_space<vmem>>) attributes {dimension_semantics = [#tpu.dimension_semantics<arbitrary>], iteration_bounds = array<i64: 1>, scalar_prefetch = 0 : i64, scratch_operands = 0 : i64, tpu.core_type = #tpu.core_type<tc>, window_params = [{pipeline_mode = #tpu.pipeline_mode<synchronous>, transform_indices = @transform_0, window_bounds = array<i64: 8, 2>}, {pipeline_mode = #tpu.pipeline_mode<synchronous>, transform_indices = @transform_1, window_bounds = array<i64: 1, 1>}]} {
    %c0 = arith.constant 0 : index
    %c0_0 = arith.constant 0 : index
    %0 = vector.load %arg1[%c0, %c0_0] : memref<8x2xf32, #tpu.memory_space<vmem>>, vector<8x2xf32>
    %1 = vector.extract_strided_slice %0 {offsets = [0, 0], sizes = [4, 2], strides = [1, 1]} : vector<8x2xf32> to vector<4x2xf32>
    %2 = vector.extract_strided_slice %0 {offsets = [4, 0], sizes = [1, 2], strides = [1, 1]} : vector<8x2xf32> to vector<1x2xf32>
    %3 = vector.extract_strided_slice %0 {offsets = [5, 0], sizes = [1, 2], strides = [1, 1]} : vector<8x2xf32> to vector<1x2xf32>
    %4 = arith.addf %2, %3 : vector<1x2xf32>
    %5 = vector.extract_strided_slice %0 {offsets = [6, 0], sizes = [1, 2], strides = [1, 1]} : vector<8x2xf32> to vector<1x2xf32>
    %6 = arith.addf %4, %5 : vector<1x2xf32>
    %7 = vector.extract_strided_slice %0 {offsets = [7, 0], sizes = [1, 2], strides = [1, 1]} : vector<8x2xf32> to vector<1x2xf32>
    %8 = arith.addf %6, %7 : vector<1x2xf32>
    %cst = arith.constant 2.500000e-01 : f32
    %9 = vector.broadcast %cst : f32 to vector<1x2xf32>
    %10 = arith.mulf %8, %9 : vector<1x2xf32>
    %11 = vector.broadcast %10 : vector<1x2xf32> to vector<4x2xf32>
    %12 = arith.subf %1, %11 : vector<4x2xf32>
    %cst_1 = arith.constant 1.000000e+00 : f32
    %13 = vector.broadcast %cst_1 : f32 to vector<4x2xf32>
    %14 = arith.subf %13, %12 : vector<4x2xf32>
    %cst_2 = arith.constant 0.000000e+00 : f32
    %15 = vector.broadcast %cst_2 : f32 to vector<4x2xf32>
    %16 = arith.maximumf %14, %15 : vector<4x2xf32>
    %cst_3 = arith.constant dense<0.000000e+00> : vector<4xf32>
    %17 = vector.multi_reduction <add>, %16, %cst_3 [1] : vector<4x2xf32> to vector<4xf32>
    %18 = vector.shape_cast %17 : vector<4xf32> to vector<4x1xf32>
    %cst_4 = arith.constant dense<0.000000e+00> : vector<1xf32>
    %19 = vector.multi_reduction <add>, %18, %cst_4 [0] : vector<4x1xf32> to vector<1xf32>
    %20 = vector.shape_cast %19 : vector<1xf32> to vector<1x1xf32>
    %cst_5 = arith.constant 1.250000e-01 : f32
    %21 = vector.broadcast %cst_5 : f32 to vector<1x1xf32>
    %22 = arith.mulf %20, %21 : vector<1x1xf32>
    %c0_6 = arith.constant 0 : index
    %c0_7 = arith.constant 0 : index
    %23 = vector.load %arg2[%c0_6, %c0_7] : memref<1x1xf32, #tpu.memory_space<vmem>>, vector<1x1xf32>
    tpu.vector_store %arg2[%c0_6, %c0_7], %22 {strides = array<i32>} : memref<1x1xf32, #tpu.memory_space<vmem>>, vector<1x1xf32>,
    return
  }
  func.func @transform_0(%arg0: i32) -> (i32, i32) {
    %c0_i32 = arith.constant 0 : i32
    %c0_i32_0 = arith.constant 0 : i32
    %c0_i32_1 = arith.constant 0 : i32
    return %c0_i32, %c0_i32_0 : i32, i32
  }
  func.func @transform_1(%arg0: i32) -> (i32, i32) {
    %c0_i32 = arith.constant 0 : i32
    %c0_i32_0 = arith.constant 0 : i32
    %c0_i32_1 = arith.constant 0 : i32
    return %c0_i32, %c0_i32_0 : i32, i32
  }
}

</mosaic_0001>

<llo_original>
// kernel: tpu_custom_call.1
$region0: #{tpu_custom_call.1}
  #allocation0 [shape = 'u32[]', space=smem, size = 0x4, offset = 0x4, fixed_abs, tag = 'smem constant byte address 0x4 - core index']
  #allocation1 [shape = 'u32[144,128]{1,0:T(1,128)}', space=vmem, size = 0x12000, scoped, tag = 'internal scratch']
  %s0 = inlined_call_operand.vmem [shape: f32[8,2], index: 0, kind: input, shape index: {}]
  %s1 = inlined_call_operand.hbm [shape: f32[1,1], index: 1, kind: output, shape index: {}]
  %s2 = sld [smem:[#allocation0]]
  $region14: #{tpu_custom_call.1} parent=0
    _
  %s4 = ssub.s32 1, %s2
  %s5 = scalar_select 0, %s4, %s2
  $region1: #{tpu_custom_call.1} parent=0
    #allocation2 [shape = 'u8[512]{0}', space=vmem, size = 0x400, scoped, tag = 'output window, operand 0, single buffered']
    #allocation3 [shape = 's32[1]{0}', space=sflag, size = 0x4, scoped, tag = 'scoped memory for tpu_custom_call.1']
    %6 = vsyncpa [#allocation3], 0
    // Predicated region
    $region2: #{tpu_custom_call.1} parent=1 // pred_check
      _
    $region3: #{tpu_custom_call.1} parent=1 // pred_check_branch
      %8 = sbr.rel (0) target = $region5
    $region4: #{tpu_custom_call.1} parent=1 // pred_region
      _
    $region5: #{tpu_custom_call.1} parent=1 // pred_fallthru
      _
    %v9 = vld [vmem:[%s0] sm:$0xff]
    %v11 = vrot.slane %v9, 1
    %v13 = vadd.f32 %v9, %v11
    %v14 = vrot.slane %v9, 2
    %v16 = vadd.f32 %v13, %v14
    %v17 = vrot.slane %v9, 3
    %v19 = vadd.f32 %v16, %v17
    %v20 = vmul.f32 %v19, 0.25
    %v21 = vlaneseq
    %v22 = vshrl.u32 %v21, 7
    %v23 = vsub.s32 4, %v22
    %v24 = vrot.slane %v20, %v23
    %v25 = vsub.f32 %v9, %v24
    %v26 = vsub.f32 1.0, %v25
    %v27 = vmax.f32 %v26, 0.0
    %vm28 = vcmask 11264
    %v29 = vsel %vm28, %v27, 0.0
    %30 = vadd.xlane.f32.xlu0 %v29
    %v31 = vpop.xlane.xlu0 %30
    %vm32 = vcmask 1043456
    %v33 = vsel %vm32, %v31, 0.0
    %v34 = vrot.slane %v33, 4
    %v35 = vadd.f32 %v33, %v34
    %v36 = vrot.slane %v35, 2
    %v37 = vadd.f32 %v35, %v36
    %v38 = vrot.slane %v37, 1
    %v39 = vadd.f32 %v37, %v38
    %v40 = vmul.f32 %v39, 0.125
    %vm41 = vcmask 0
    %42 = vst.msk [vmem:[#allocation2] sm:$0x1] %vm41, %v40
    // Predicated region
    $region6: #{tpu_custom_call.1} parent=1 // pred_check
      _
    $region7: #{tpu_custom_call.1} parent=1 // pred_check_branch
      %44 = sbr.rel (0) target = $region9
    $region8: #{tpu_custom_call.1} parent=1 // pred_region
      %s46 = ssub.s32 16, 16
      %47 = vsyncadd [#allocation3], %s46
      %s49 = sshll.u32 [#allocation2], 4
      %s50 = int_to_ptr.vmem [resolvable:$true] %s49
      %52 = dma.vmem_to_hbm [thread:$0]  %s50, 16, %s1, [#allocation3]
    $region9: #{tpu_custom_call.1} parent=1 // pred_fallthru
      _
    // Predicated region
    $region10: #{tpu_custom_call.1} parent=1 // pred_check
      _
    $region11: #{tpu_custom_call.1} parent=1 // pred_check_branch
      %54 = sbr.rel (0) target = $region13
    $region12: #{tpu_custom_call.1} parent=1 // pred_region
      %55 = dma.done [#allocation3], 16
    $region13: #{tpu_custom_call.1} parent=1 // pred_fallthru
      _
    %56 = vsyncpa [#allocation3], 1

</llo_original>
